<compile_context>
chip_gen: v5e
topology: v5e:2x2
jax: 0.10.0
libtpu: 0.0.40
codegen_flags: <defaults>
</compile_context>

<pallas_src>
import functools

import jax
import jax.numpy as jnp
from jax.experimental import pallas as pl
from jax.experimental.pallas import tpu as pltpu


# ----------------------------- folded channel MLP -----------------------------

def _channel_attention(max_f, avg_f, w1t, b1_row, w2t, b2_row):
    """max_f/avg_f: (N, C) rows. w1t: (C, C//8), w2t: (C//8, C). Biases lane-major."""
    h = (jnp.maximum(jnp.dot(max_f, w1t, preferred_element_type=jnp.float32)
                     + b1_row, 0.0)
         + jnp.maximum(jnp.dot(avg_f, w1t, preferred_element_type=jnp.float32)
                       + b1_row, 0.0))                                  # (N, C//8)
    out = jnp.dot(h, w2t, preferred_element_type=jnp.float32) + 2.0 * b2_row
    return jax.nn.sigmoid(out)                                          # (N, C)


# ----------------------------- single-pass path ------------------------------

def _attn_single_pass_kernel(strip, x_ref, w1t_ref, b1_ref, w2t_ref, b2_ref, o_ref):
    # x_ref block: (TB, C, HW). Fused max+sum reduction sweeps the block once in
    # static HW strips (f32 accumulation), then the broadcast multiply re-reads
    # the block from VMEM -> 2 load passes instead of 3, no block-sized live range.
    tb, c, hw = x_ref.shape
    n_strips = hw // strip

    max_f = jnp.full((tb, c), -jnp.inf, dtype=jnp.float32)
    sum_f = jnp.zeros((tb, c), dtype=jnp.float32)
    for k in range(n_strips):                       # static, bounded (<= 16) unroll
        s = x_ref[:, :, k * strip:(k + 1) * strip].astype(jnp.float32)
        max_f = jnp.maximum(max_f, jnp.max(s, axis=-1))
        sum_f = sum_f + jnp.sum(s, axis=-1)
    avg_f = sum_f * (1.0 / hw)

    att = _channel_attention(max_f, avg_f,
                             w1t_ref[...], b1_ref[...],
                             w2t_ref[...], b2_ref[...])                 # (TB, C)

    o_ref[...] = (x_ref[...] * att[:, :, None]).astype(o_ref.dtype)


def _single_pass_call(x_flat, w1t, b1_row, w2t, b2_row, tb, strip,
                      vmem_limit_bytes, donate_input):
    b, c, hw = x_flat.shape
    return pl.pallas_call(
        functools.partial(_attn_single_pass_kernel, strip),
        out_shape=jax.ShapeDtypeStruct((b, c, hw), x_flat.dtype),
        grid_spec=pltpu.PrefetchScalarGridSpec(
            num_scalar_prefetch=0,
            grid=(b // tb,),
            in_specs=[
                pl.BlockSpec((tb, c, hw), lambda i: (i, 0, 0)),   # x (TB batches)
                pl.BlockSpec(w1t.shape, lambda i: (0, 0)),        # fc1 weight^T
                pl.BlockSpec(b1_row.shape, lambda i: (0, 0)),     # fc1 bias (lane-major)
                pl.BlockSpec(w2t.shape, lambda i: (0, 0)),        # fc2 weight^T
                pl.BlockSpec(b2_row.shape, lambda i: (0, 0)),     # fc2 bias (lane-major)
            ],
            out_specs=pl.BlockSpec((tb, c, hw), lambda i: (i, 0, 0)),
        ),
        compiler_params=pltpu.CompilerParams(
            dimension_semantics=("parallel",),
            vmem_limit_bytes=vmem_limit_bytes),
        input_output_aliases=({0: 0} if donate_input else {}),
    )(x_flat, w1t, b1_row, w2t, b2_row)


# ------------------------------ two-pass path ---------------------------------

def _pool_mlp_kernel(inv_hw, valid_hw, x_ref, w1t_ref, b1_ref, w2t_ref, b2_ref,
                     att_ref, max_sc, sum_sc):
    # x_ref block: (1, C, T). Running max/sum live in lane-dense (1, C) f32
    # scratch; the tiny MLP runs once per batch, on the last HW tile.
    # valid_hw != None <=> HW was zero-padded to a multiple of 128 in the
    # wrapper: mask the max so padded lanes can't win (zeros add nothing to sum).
    j = pl.program_id(1)
    t = x_ref.shape[-1]

    @pl.when(j == 0)
    def _():
        max_sc[...] = jnp.full_like(max_sc, -jnp.inf)
        sum_sc[...] = jnp.zeros_like(sum_sc)

    x = x_ref[0].astype(jnp.float32)                                  # (C, T)
    if valid_hw is not None:
        lane = jax.lax.broadcasted_iota(jnp.int32, x.shape, 1)
        x_for_max = jnp.where(lane < (valid_hw - j * t), x, -jnp.inf)
    else:
        x_for_max = x

    max_sc[...] = jnp.maximum(
        max_sc[...], jnp.transpose(jnp.max(x_for_max, axis=-1, keepdims=True)))
    sum_sc[...] = sum_sc[...] + jnp.transpose(
        jnp.sum(x, axis=-1, keepdims=True))

    @pl.when(j == pl.num_programs(1) - 1)
    def _():
        att_ref[0] = _channel_attention(max_sc[...], sum_sc[...] * inv_hw,
                                        w1t_ref[...], b1_ref[...],
                                        w2t_ref[...], b2_ref[...])    # (1, C)


def _apply_attention_kernel(x_ref, att_ref, o_ref):
    # att arrives lane-dense (1, 1, C); one tiny transpose to a (C, 1) splat and
    # a broadcast multiply over the spatial (lane) axis. XLU has full slack here.
    att_col = jnp.transpose(att_ref[0])                               # (C, 1)
    o_ref[...] = (x_ref[...] * att_col[None]).astype(o_ref.dtype)


def _two_pass_call(x_flat, w1t, b1_row, w2t, b2_row, hw_tile, true_hw,
                   vmem_limit_bytes, donate_input):
    b, c, hw_pad = x_flat.shape
    n_hw = hw_pad // hw_tile
    valid_hw = None if true_hw == hw_pad else true_hw

    att = pl.pallas_call(
        functools.partial(_pool_mlp_kernel, 1.0 / true_hw, valid_hw),
        out_shape=jax.ShapeDtypeStruct((b, 1, c), jnp.float32),       # lane-dense
        grid_spec=pltpu.PrefetchScalarGridSpec(
            num_scalar_prefetch=0,
            grid=(b, n_hw),
            in_specs=[
                pl.BlockSpec((1, c, hw_tile), lambda i, j: (i, 0, j)),
                pl.BlockSpec(w1t.shape, lambda i, j: (0, 0)),
                pl.BlockSpec(b1_row.shape, lambda i, j: (0, 0)),
                pl.BlockSpec(w2t.shape, lambda i, j: (0, 0)),
                pl.BlockSpec(b2_row.shape, lambda i, j: (0, 0)),
            ],
            out_specs=pl.BlockSpec((1, 1, c), lambda i, j: (i, 0, 0)),
            scratch_shapes=[pltpu.VMEM((1, c), jnp.float32),
                            pltpu.VMEM((1, c), jnp.float32)],
        ),
        compiler_params=pltpu.CompilerParams(
            dimension_semantics=("parallel", "arbitrary"),
            vmem_limit_bytes=vmem_limit_bytes),
    )(x_flat, w1t, b1_row, w2t, b2_row)

    # TODO(synk): for B < num_tensorcores (v7x), additionally split HW across a
    # second parallel grid axis with partial pooled outputs + a tiny combine so
    # both TensorCores stream pass 1; skipped here (only affects small-B v7x).

    return pl.pallas_call(
        _apply_attention_kernel,
        out_shape=jax.ShapeDtypeStruct((b, c, hw_pad), x_flat.dtype),
        grid_spec=pltpu.PrefetchScalarGridSpec(
            num_scalar_prefetch=0,
            grid=(b, n_hw),
            in_specs=[
                pl.BlockSpec((1, c, hw_tile), lambda i, j: (i, 0, j)),
                pl.BlockSpec((1, 1, c), lambda i, j: (i, 0, 0)),
            ],
            out_specs=pl.BlockSpec((1, c, hw_tile), lambda i, j: (i, 0, j)),
        ),
        compiler_params=pltpu.CompilerParams(
            dimension_semantics=("parallel", "parallel"),
            vmem_limit_bytes=vmem_limit_bytes),
        input_output_aliases=({0: 0} if donate_input else {}),
    )(x_flat, att)


# ----------------------------- tiling heuristics ------------------------------

def _tpu_vmem_and_cores():
    """(physical VMEM bytes per core, TensorCores per device), with safe fallbacks."""
    vmem_cap = 64 << 20                       # conservative default (v7x per-TC)
    try:
        info = pltpu.get_tpu_info()
        cap = getattr(info, "vmem_capacity_bytes", None)
        if cap:
            vmem_cap = int(cap)
    except Exception:
        pass
    cores = 1
    try:
        dev = jax.devices()[0]
        kind = (getattr(dev, "device_kind", "") or "").lower()
        n = getattr(dev, "num_cores", None)
        if isinstance(n, int) and n > 0:
            cores = n
        elif any(tag in kind for tag in ("v7", "7x", "v4", "v5p")):
            cores = 2
    except Exception:
        pass
    return vmem_cap, max(1, cores)


def _pick_batch_tile(b, per_batch_bytes, target_bytes, num_cores):
    cap = max(1, int(target_bytes) // max(1, int(per_batch_bytes)))
    if num_cores > 1 and b >= 2:
        # Only on multi-TensorCore parts: keep enough grid steps for every core.
        cap = min(cap, max(1, b // num_cores))
    cap = max(1, min(cap, b))
    for cand in range(cap, 0, -1):
        if b % cand == 0:
            return cand
    return 1


def _pick_hw_tile(hw, c, itemsize, target_bytes):
    # Largest divisor of HW that is a multiple of 128 and keeps C*T under the
    # target block size; minimum legal tile is 128 lanes.
    best = 128
    for k in range(1, hw // 128 + 1):
        t = 128 * k
        if hw % t == 0 and c * t * itemsize <= target_bytes:
            best = t
    return best


def _pick_strip(hw, max_strips=16):
    # Smallest multiple-of-128 divisor of HW giving <= max_strips strips, so the
    # fused max+sum sweep in the single-pass kernel is a bounded static unroll.
    if hw % 128 != 0:
        return hw
    for k in range(1, hw // 128 + 1):
        t = 128 * k
        if hw % t == 0 and hw // t <= max_strips:
            return t
    return hw


# --------------------------------- wrapper ------------------------------------

def attention_block(x, w1, b1, w2, b2, *,
                    target_block_bytes=4 * 1024 * 1024,
                    single_pass_max_block_bytes=None,
                    donate_input=False):
    """x: (B, C, H, W). w1: (C//8, C), b1: (C//8,), w2: (C, C//8), b2: (C,).

    donate_input=True adds input_output_aliases={0: 0} (output reuses x's HBM
    buffer). Only enable when x is dead after this call inside a jit; otherwise
    XLA inserts a defensive copy.
    """
    b, c, h, w = x.shape
    hw = h * w
    x_flat = x.reshape(b, c, hw)

    # Row-major (lane-dense) parameter layout: weights transposed once on the
    # host; biases as (1, K) rows so they don't pad the lane dim to 128 in VMEM.
    w1t = jnp.transpose(w1).astype(jnp.float32)      # (C, C//8)
    w2t = jnp.transpose(w2).astype(jnp.float32)      # (C//8, C)
    b1_row = b1.reshape(1, -1).astype(jnp.float32)   # (1, C//8)
    b2_row = b2.reshape(1, -1).astype(jnp.float32)   # (1, C)

    itemsize = x.dtype.itemsize
    per_batch = c * hw * itemsize
    param_bytes = 2 * 4 * (w1t.size + w2t.size + b1_row.size + b2_row.size)

    vmem_cap, num_cores = _tpu_vmem_and_cores()
    vmem_budget = max(vmem_cap - (8 << 20), 24 << 20)   # physical cap - headroom

    if single_pass_max_block_bytes is None:
        # Keep 4x block (in + out, double-buffered) + params under ~80% of VMEM:
        # ~24 MiB/batch on 128 MiB v5e/v6e, ~12 MiB/batch on 64 MiB v7x.
        single_pass_max_block_bytes = max(
            ((vmem_cap * 4) // 5 - param_bytes - (4 << 20)) // 4, 2 << 20)

    def _vmem_limit(block_bytes):
        want = 4 * block_bytes + param_bytes + (4 << 20)
        return int(min(max(want, 32 << 20), vmem_budget))

    if per_batch <= single_pass_max_block_bytes:
        # Single pass: 1 read + 1 write of x.
        tb = _pick_batch_tile(b, per_batch, target_block_bytes, num_cores)
        out_flat = _single_pass_call(
            x_flat, w1t, b1_row, w2t, b2_row, tb, _pick_strip(hw),
            _vmem_limit(tb * per_batch), donate_input)
    else:
        # Two passes: 2 reads + 1 write of x, but every block fits any VMEM.
        hw_pad = ((hw + 127) // 128) * 128
        if hw_pad != hw:
            # TODO(synk): zero-padding costs one extra read+write of x for this
            # ragged-HW corner; masked edge-block DMA would avoid the copy.
            x_flat = jnp.pad(x_flat, ((0, 0), (0, 0), (0, hw_pad - hw)))
        hw_tile = _pick_hw_tile(hw_pad, c, itemsize, target_block_bytes)
        out_flat = _two_pass_call(
            x_flat, w1t, b1_row, w2t, b2_row, hw_tile, hw,
            _vmem_limit(c * hw_tile * itemsize), donate_input)
        if hw_pad != hw:
            out_flat = out_flat[:, :, :hw]

    return out_flat.reshape(b, c, h, w)


# -------------------------------- reference -----------------------------------

def _reference(x, w1, b1, w2, b2):
    # Pure-JAX reference mirroring the PyTorch forward exactly (no MLP folding).
    b, c, h, w = x.shape
    xf = x.reshape(b, c, h * w).astype(jnp.float32)
    max_f = jnp.max(xf, axis=-1).reshape(b, 1, c)
    avg_f = jnp.mean(xf, axis=-1).reshape(b, 1, c)
    cha_f = jnp.concatenate([max_f, avg_f], axis=1)                     # (b, 2, c)
    h1 = jnp.maximum(jnp.einsum('bnc,oc->bno', cha_f, w1) + b1, 0.0)    # (b, 2, c//8)
    o1 = jnp.einsum('bno,co->bnc', h1, w2) + b2                         # (b, 2, c)
    att = jax.nn.sigmoid(o1[:, 0, :] + o1[:, 1, :]).reshape(b, c, 1, 1)
    return (x * att).astype(x.dtype)


if __name__ == "__main__":
    key = jax.random.PRNGKey(0)
    C = 32                              # input_channel=32 (C/8 = 4)
    k_x, k_w1, k_b1, k_w2, k_b2, k_x2, k_x3 = jax.random.split(key, 7)

    # Deterministic params mimicking nn.Linear init (uniform +-1/sqrt(fan_in)).
    lim1 = 1.0 / jnp.sqrt(jnp.float32(C))
    w1 = jax.random.uniform(k_w1, (C // 8, C), jnp.float32, -lim1, lim1)
    b1 = jax.random.uniform(k_b1, (C // 8,), jnp.float32, -lim1, lim1)
    lim2 = 1.0 / jnp.sqrt(jnp.float32(C // 8))
    w2 = jax.random.uniform(k_w2, (C, C // 8), jnp.float32, -lim2, lim2)
    b2 = jax.random.uniform(k_b2, (C,), jnp.float32, -lim2, lim2)

    # --- Test 1: default routing (single-pass, single strip). -----------------
    x = jax.random.normal(k_x, (2, C, 16, 16), dtype=jnp.float32)
    ref = _reference(x, w1, b1, w2, b2)
    out = jax.block_until_ready(attention_block(x, w1, b1, w2, b2))
    assert out.shape == x.shape
    assert jnp.allclose(out, ref, atol=2e-5, rtol=1e-5), "single-pass mismatch"

    # --- Test 2: forced two-pass (HW tiled, lane-dense att) on same input. ----
    out2 = jax.block_until_ready(
        attention_block(x, w1, b1, w2, b2,
                        target_block_bytes=16 * 1024,
                        single_pass_max_block_bytes=0))
    assert jnp.allclose(out2, ref, atol=2e-5, rtol=1e-5), "two-pass mismatch"

    # --- Test 3: single-pass with a multi-strip fused reduction (HW=2304). ----
    x3 = jax.random.normal(k_x2, (2, C, 48, 48), dtype=jnp.float32)
    ref3 = _reference(x3, w1, b1, w2, b2)
    out3 = jax.block_until_ready(attention_block(x3, w1, b1, w2, b2))
    assert jnp.allclose(out3, ref3, atol=2e-5, rtol=1e-5), "strip-loop mismatch"

    # --- Test 4: ragged HW (225 lanes): single-pass and padded two-pass. ------
    x4 = jax.random.normal(k_x3, (2, C, 15, 15), dtype=jnp.float32)
    ref4 = _reference(x4, w1, b1, w2, b2)
    out4a = jax.block_until_ready(attention_block(x4, w1, b1, w2, b2))
    assert jnp.allclose(out4a, ref4, atol=2e-5, rtol=1e-5), "ragged single-pass mismatch"
    out4b = jax.block_until_ready(
        attention_block(x4, w1, b1, w2, b2,
                        target_block_bytes=16 * 1024,
                        single_pass_max_block_bytes=0))
    assert jnp.allclose(out4b, ref4, atol=2e-5, rtol=1e-5), "padded two-pass mismatch"

    print("KERNEL_OK")
</pallas_src>

<mosaic_0001>
module attributes {stable_mosaic.version = 11 : i64} {
  func.func @_attn_single_pass_kernel(%arg0: i32, %arg1: memref<2x32x256xf32, #tpu.memory_space<vmem>>, %arg2: memref<32x4xf32, #tpu.memory_space<vmem>>, %arg3: memref<1x4xf32, #tpu.memory_space<vmem>>, %arg4: memref<4x32xf32, #tpu.memory_space<vmem>>, %arg5: memref<1x32xf32, #tpu.memory_space<vmem>>, %arg6: memref<2x32x256xf32, #tpu.memory_space<vmem>>) attributes {dimension_semantics = [#tpu.dimension_semantics<parallel>], iteration_bounds = array<i64: 1>, scalar_prefetch = 0 : i64, scratch_operands = 0 : i64, tpu.core_type = #tpu.core_type<tc>, window_params = [{transform_indices = @transform_0, window_bounds = array<i64: 2, 32, 256>}, {pipeline_mode = #tpu.pipeline_mode<synchronous>, transform_indices = @transform_1, window_bounds = array<i64: 32, 4>}, {pipeline_mode = #tpu.pipeline_mode<synchronous>, transform_indices = @transform_2, window_bounds = array<i64: 1, 4>}, {pipeline_mode = #tpu.pipeline_mode<synchronous>, transform_indices = @transform_3, window_bounds = array<i64: 4, 32>}, {pipeline_mode = #tpu.pipeline_mode<synchronous>, transform_indices = @transform_4, window_bounds = array<i64: 1, 32>}, {transform_indices = @transform_5, window_bounds = array<i64: 2, 32, 256>}]} {
    %cst = arith.constant 0xFF800000 : f32
    %0 = vector.broadcast %cst : f32 to vector<2x32xf32>
    %cst_0 = arith.constant 0.000000e+00 : f32
    %1 = vector.broadcast %cst_0 : f32 to vector<2x32xf32>
    %c0 = arith.constant 0 : index
    %c0_1 = arith.constant 0 : index
    %c0_2 = arith.constant 0 : index
    %2 = vector.load %arg1[%c0, %c0_1, %c0_2] : memref<2x32x256xf32, #tpu.memory_space<vmem>>, vector<2x32x128xf32>
    %cst_3 = arith.constant dense<0xFF800000> : vector<2x32xf32>
    %3 = vector.multi_reduction <maximumf>, %2, %cst_3 [2] : vector<2x32x128xf32> to vector<2x32xf32>
    %4 = arith.maximumf %0, %3 : vector<2x32xf32>
    %cst_4 = arith.constant dense<0.000000e+00> : vector<2x32xf32>
    %5 = vector.multi_reduction <add>, %2, %cst_4 [2] : vector<2x32x128xf32> to vector<2x32xf32>
    %6 = arith.addf %1, %5 : vector<2x32xf32>
    %c0_5 = arith.constant 0 : index
    %c0_6 = arith.constant 0 : index
    %c128 = arith.constant 128 : index
    %7 = vector.load %arg1[%c0_5, %c0_6, %c128] : memref<2x32x256xf32, #tpu.memory_space<vmem>>, vector<2x32x128xf32>
    %cst_7 = arith.constant dense<0xFF800000> : vector<2x32xf32>
    %8 = vector.multi_reduction <maximumf>, %7, %cst_7 [2] : vector<2x32x128xf32> to vector<2x32xf32>
    %9 = arith.maximumf %4, %8 : vector<2x32xf32>
    %cst_8 = arith.constant dense<0.000000e+00> : vector<2x32xf32>
    %10 = vector.multi_reduction <add>, %7, %cst_8 [2] : vector<2x32x128xf32> to vector<2x32xf32>
    %11 = arith.addf %6, %10 : vector<2x32xf32>
    %cst_9 = arith.constant 3.906250e-03 : f32
    %12 = vector.broadcast %cst_9 : f32 to vector<2x32xf32>
    %13 = arith.mulf %11, %12 : vector<2x32xf32>
    %c0_10 = arith.constant 0 : index
    %c0_11 = arith.constant 0 : index
    %14 = vector.load %arg2[%c0_10, %c0_11] : memref<32x4xf32, #tpu.memory_space<vmem>>, vector<32x4xf32>
    %c0_12 = arith.constant 0 : index
    %c0_13 = arith.constant 0 : index
    %15 = vector.load %arg3[%c0_12, %c0_13] : memref<1x4xf32, #tpu.memory_space<vmem>>, vector<1x4xf32>
    %c0_14 = arith.constant 0 : index
    %c0_15 = arith.constant 0 : index
    %16 = vector.load %arg4[%c0_14, %c0_15] : memref<4x32xf32, #tpu.memory_space<vmem>>, vector<4x32xf32>
    %c0_16 = arith.constant 0 : index
    %c0_17 = arith.constant 0 : index
    %17 = vector.load %arg5[%c0_16, %c0_17] : memref<1x32xf32, #tpu.memory_space<vmem>>, vector<1x32xf32>
    %cst_18 = arith.constant dense<0.000000e+00> : vector<2x4xf32>
    %18 = tpu.matmul %9, %14, %cst_18 {dimension_numbers = #tpu.dot_dimension_numbers<[1], [0], [0], [1], [0, 0, 1, 1], [], []>} : vector<2x32xf32>, vector<32x4xf32>, vector<2x4xf32> -> vector<2x4xf32>
    %19 = vector.broadcast %15 : vector<1x4xf32> to vector<2x4xf32>
    %20 = arith.addf %18, %19 : vector<2x4xf32>
    %cst_19 = arith.constant 0.000000e+00 : f32
    %21 = vector.broadcast %cst_19 : f32 to vector<2x4xf32>
    %22 = arith.maximumf %20, %21 : vector<2x4xf32>
    %cst_20 = arith.constant dense<0.000000e+00> : vector<2x4xf32>
    %23 = tpu.matmul %13, %14, %cst_20 {dimension_numbers = #tpu.dot_dimension_numbers<[1], [0], [0], [1], [0, 0, 1, 1], [], []>} : vector<2x32xf32>, vector<32x4xf32>, vector<2x4xf32> -> vector<2x4xf32>
    %24 = vector.broadcast %15 : vector<1x4xf32> to vector<2x4xf32>
    %25 = arith.addf %23, %24 : vector<2x4xf32>
    %cst_21 = arith.constant 0.000000e+00 : f32
    %26 = vector.broadcast %cst_21 : f32 to vector<2x4xf32>
    %27 = arith.maximumf %25, %26 : vector<2x4xf32>
    %28 = arith.addf %22, %27 : vector<2x4xf32>
    %cst_22 = arith.constant dense<0.000000e+00> : vector<2x32xf32>
    %29 = tpu.matmul %28, %16, %cst_22 {dimension_numbers = #tpu.dot_dimension_numbers<[1], [0], [0], [1], [0, 0, 1, 1], [], []>} : vector<2x4xf32>, vector<4x32xf32>, vector<2x32xf32> -> vector<2x32xf32>
    %cst_23 = arith.constant 2.000000e+00 : f32
    %30 = vector.broadcast %cst_23 : f32 to vector<1x32xf32>
    %31 = arith.mulf %30, %17 : vector<1x32xf32>
    %32 = vector.broadcast %31 : vector<1x32xf32> to vector<2x32xf32>
    %33 = arith.addf %29, %32 : vector<2x32xf32>
    %34 = arith.negf %33 : vector<2x32xf32>
    %35 = math.exp %34 : vector<2x32xf32>
    %cst_24 = arith.constant 1.000000e+00 : f32
    %36 = vector.broadcast %cst_24 : f32 to vector<2x32xf32>
    %37 = arith.addf %36, %35 : vector<2x32xf32>
    %38 = arith.divf %36, %37 : vector<2x32xf32>
    %c0_25 = arith.constant 0 : index
    %c0_26 = arith.constant 0 : index
    %c0_27 = arith.constant 0 : index
    %39 = vector.load %arg1[%c0_25, %c0_26, %c0_27] : memref<2x32x256xf32, #tpu.memory_space<vmem>>, vector<2x32x256xf32>
    %40 = vector.shape_cast %38 : vector<2x32xf32> to vector<2x32x1xf32>
    %41 = vector.broadcast %40 : vector<2x32x1xf32> to vector<2x32x256xf32>
    %42 = arith.mulf %39, %41 : vector<2x32x256xf32>
    %c0_28 = arith.constant 0 : index
    %c0_29 = arith.constant 0 : index
    %c0_30 = arith.constant 0 : index
    %43 = vector.load %arg6[%c0_28, %c0_29, %c0_30] : memref<2x32x256xf32, #tpu.memory_space<vmem>>, vector<2x32x256xf32>
    tpu.vector_store %arg6[%c0_28, %c0_29, %c0_30], %42 {strides = array<i32>} : memref<2x32x256xf32, #tpu.memory_space<vmem>>, vector<2x32x256xf32>,
    return
  }
  func.func @transform_0(%arg0: i32) -> (i32, i32, i32) {
    %c0_i32 = arith.constant 0 : i32
    %c0_i32_0 = arith.constant 0 : i32
    %c0_i32_1 = arith.constant 0 : i32
    return %arg0, %c0_i32, %c0_i32_0 : i32, i32, i32
  }
  func.func @transform_1(%arg0: i32) -> (i32, i32) {
    %c0_i32 = arith.constant 0 : i32
    %c0_i32_0 = arith.constant 0 : i32
    %c0_i32_1 = arith.constant 0 : i32
    return %c0_i32, %c0_i32_0 : i32, i32
  }
  func.func @transform_2(%arg0: i32) -> (i32, i32) {
    %c0_i32 = arith.constant 0 : i32
    %c0_i32_0 = arith.constant 0 : i32
    %c0_i32_1 = arith.constant 0 : i32
    return %c0_i32, %c0_i32_0 : i32, i32
  }
  func.func @transform_3(%arg0: i32) -> (i32, i32) {
    %c0_i32 = arith.constant 0 : i32
    %c0_i32_0 = arith.constant 0 : i32
    %c0_i32_1 = arith.constant 0 : i32
    return %c0_i32, %c0_i32_0 : i32, i32
  }
  func.func @transform_4(%arg0: i32) -> (i32, i32) {
    %c0_i32 = arith.constant 0 : i32
    %c0_i32_0 = arith.constant 0 : i32
    %c0_i32_1 = arith.constant 0 : i32
    return %c0_i32, %c0_i32_0 : i32, i32
  }
  func.func @transform_5(%arg0: i32) -> (i32, i32, i32) {
    %c0_i32 = arith.constant 0 : i32
    %c0_i32_0 = arith.constant 0 : i32
    %c0_i32_1 = arith.constant 0 : i32
    return %arg0, %c0_i32, %c0_i32_0 : i32, i32, i32
  }
}

</mosaic_0001>

<llo_original>
// kernel: tpu_custom_call.1
$region0: #{tpu_custom_call.1}
  #allocation0 [shape = 'u32[]', space=smem, size = 0x4, offset = 0x4, fixed_abs, tag = 'smem constant byte address 0x4 - core index']
  #allocation1 [shape = 'u32[72,128]{1,0:T(1,128)}', space=vmem, size = 0x9000, scoped, tag = 'internal scratch']
  %s0 = inlined_call_operand.hbm [shape: f32[2,32,256], index: 0, kind: input, shape index: {}]
  %s1 = inlined_call_operand.vmem [shape: f32[32,4], index: 1, kind: input, shape index: {}]
  %s2 = inlined_call_operand.vmem [shape: f32[1,4], index: 2, kind: input, shape index: {}]
  %s3 = inlined_call_operand.vmem [shape: f32[4,32], index: 3, kind: input, shape index: {}]
  %s4 = inlined_call_operand.vmem [shape: f32[1,32], index: 4, kind: input, shape index: {}]
  %s5 = inlined_call_operand.hbm [shape: f32[2,32,256], index: 5, kind: output, shape index: {}]
  %s6 = sld [smem:[#allocation0]]
  $region34: #{tpu_custom_call.1} parent=0
    _
  %s8 = ssub.s32 1, %s6
  %s9 = scalar_select 0, %s8, %s6
  $region1: #{tpu_custom_call.1} parent=0
    #allocation2 [shape = 'u8[65536]{0}', space=vmem, size = 0x10000, scoped, tag = 'input window, operand 0, single buffered']
    #allocation3 [shape = 's32[1]{0}', space=sflag, size = 0x4, scoped, tag = 'scoped memory for tpu_custom_call.1']
    #allocation4 [shape = 's32[1]{0}', space=sflag, size = 0x4, scoped, tag = 'scoped memory for tpu_custom_call.1']
    #allocation5 [shape = 'u8[65536]{0}', space=vmem, size = 0x10000, scoped, tag = 'output window, operand 0, single buffered']
    %10 = vsyncpa [#allocation3], 0
    %11 = vsyncpa [#allocation4], 0
    // Predicated region
    $region2: #{tpu_custom_call.1} parent=1 // pred_check
      _
    $region3: #{tpu_custom_call.1} parent=1 // pred_check_branch
      %13 = sbr.rel (0) target = $region5
    $region4: #{tpu_custom_call.1} parent=1 // pred_region
      %15 = vsyncadd [#allocation3], 0
      %s16 = sshll.u32 %s0, 4
      %s17 = int_to_ptr.hbm [resolvable:$true] %s16
      %s18 = sshll.u32 [#allocation2], 4
      %s19 = int_to_ptr.vmem [resolvable:$true] %s18
      %24 = dma.hbm_to_vmem [thread:$0]  %s17, 2048, %s19, [#allocation3], 256, 256, 16
    $region5: #{tpu_custom_call.1} parent=1 // pred_fallthru
      _
    // Predicated region
    $region6: #{tpu_custom_call.1} parent=1 // pred_check
      _
    $region7: #{tpu_custom_call.1} parent=1 // pred_check_branch
      %26 = sbr.rel (0) target = $region9
    $region8: #{tpu_custom_call.1} parent=1 // pred_region
      _
    $region9: #{tpu_custom_call.1} parent=1 // pred_fallthru
      _
    // Predicated region
    $region10: #{tpu_custom_call.1} parent=1 // pred_check
      _
    $region11: #{tpu_custom_call.1} parent=1 // pred_check_branch
      %28 = sbr.rel (0) target = $region13
    $region12: #{tpu_custom_call.1} parent=1 // pred_region
      _
    $region13: #{tpu_custom_call.1} parent=1 // pred_fallthru
      _
    // Predicated region
    $region14: #{tpu_custom_call.1} parent=1 // pred_check
      _
    $region15: #{tpu_custom_call.1} parent=1 // pred_check_branch
      %30 = sbr.rel (0) target = $region17
    $region16: #{tpu_custom_call.1} parent=1 // pred_region
      _
    $region17: #{tpu_custom_call.1} parent=1 // pred_fallthru
      _
    // Predicated region
    $region18: #{tpu_custom_call.1} parent=1 // pred_check
      _
    $region19: #{tpu_custom_call.1} parent=1 // pred_check_branch
      %32 = sbr.rel (0) target = $region21
    $region20: #{tpu_custom_call.1} parent=1 // pred_region
      _
    $region21: #{tpu_custom_call.1} parent=1 // pred_fallthru
      _
    // Predicated region
    $region22: #{tpu_custom_call.1} parent=1 // pred_check
      _
    $region23: #{tpu_custom_call.1} parent=1 // pred_check_branch
      %34 = sbr.rel (0) target = $region25
    $region24: #{tpu_custom_call.1} parent=1 // pred_region
      %36 = dma.done [#allocation3], 2048
    $region25: #{tpu_custom_call.1} parent=1 // pred_fallthru
      _
    %v37 = vld [vmem:[#allocation2] sm:$0xff]
    %v38 = vld [vmem:[#allocation2 + $0x10] sm:$0xff]
    %v39 = vld [vmem:[#allocation2 + $0x20] sm:$0xff]
    %v40 = vld [vmem:[#allocation2 + $0x30] sm:$0xff]
    %v41 = vld [vmem:[#allocation2 + $0x40] sm:$0xff]
    %v42 = vld [vmem:[#allocation2 + $0x50] sm:$0xff]
    %v43 = vld [vmem:[#allocation2 + $0x60] sm:$0xff]
    %v44 = vld [vmem:[#allocation2 + $0x70] sm:$0xff]
    %45 = vmax.xlane.f32.xlu0 %v37
    %v46 = vpop.xlane.xlu0 %45
    %47 = vmax.xlane.f32.xlu0 %v38
    %v48 = vpop.xlane.xlu0 %47
    %49 = vmax.xlane.f32.xlu0 %v39
    %v50 = vpop.xlane.xlu0 %49
    %51 = vmax.xlane.f32.xlu0 %v40
    %v52 = vpop.xlane.xlu0 %51
    %53 = vmax.xlane.f32.xlu0 %v41
    %v54 = vpop.xlane.xlu0 %53
    %55 = vmax.xlane.f32.xlu0 %v42
    %v56 = vpop.xlane.xlu0 %55
    %57 = vmax.xlane.f32.xlu0 %v43
    %v58 = vpop.xlane.xlu0 %57
    %59 = vmax.xlane.f32.xlu0 %v44
    %v60 = vpop.xlane.xlu0 %59
    %61 = vadd.xlane.f32.xlu0 %v37
    %v62 = vpop.xlane.xlu0 %61
    %63 = vadd.xlane.f32.xlu0 %v38
    %v64 = vpop.xlane.xlu0 %63
    %65 = vadd.xlane.f32.xlu0 %v39
    %v66 = vpop.xlane.xlu0 %65
    %67 = vadd.xlane.f32.xlu0 %v40
    %v68 = vpop.xlane.xlu0 %67
    %69 = vadd.xlane.f32.xlu0 %v41
    %v70 = vpop.xlane.xlu0 %69
    %71 = vadd.xlane.f32.xlu0 %v42
    %v72 = vpop.xlane.xlu0 %71
    %73 = vadd.xlane.f32.xlu0 %v43
    %v74 = vpop.xlane.xlu0 %73
    %75 = vadd.xlane.f32.xlu0 %v44
    %v76 = vpop.xlane.xlu0 %75
    %v77 = vadd.f32 %v62, 0.0
    %v78 = vadd.f32 %v64, 0.0
    %v79 = vadd.f32 %v66, 0.0
    %v80 = vadd.f32 %v68, 0.0
    %v81 = vadd.f32 %v70, 0.0
    %v82 = vadd.f32 %v72, 0.0
    %v83 = vadd.f32 %v74, 0.0
    %v84 = vadd.f32 %v76, 0.0
    %v85 = vld [vmem:[#allocation2 + $0x8] sm:$0xff]
    %v86 = vld [vmem:[#allocation2 + $0x18] sm:$0xff]
    %v87 = vld [vmem:[#allocation2 + $0x28] sm:$0xff]
    %v88 = vld [vmem:[#allocation2 + $0x38] sm:$0xff]
    %v89 = vld [vmem:[#allocation2 + $0x48] sm:$0xff]
    %v90 = vld [vmem:[#allocation2 + $0x58] sm:$0xff]
    %v91 = vld [vmem:[#allocation2 + $0x68] sm:$0xff]
    %v92 = vld [vmem:[#allocation2 + $0x78] sm:$0xff]
    %93 = vmax.xlane.f32.xlu0 %v85
    %v94 = vpop.xlane.xlu0 %93
    %95 = vmax.xlane.f32.xlu0 %v86
    %v96 = vpop.xlane.xlu0 %95
    %97 = vmax.xlane.f32.xlu0 %v87
    %v98 = vpop.xlane.xlu0 %97
    %99 = vmax.xlane.f32.xlu0 %v88
    %v100 = vpop.xlane.xlu0 %99
    %101 = vmax.xlane.f32.xlu0 %v89
    %v102 = vpop.xlane.xlu0 %101
    %103 = vmax.xlane.f32.xlu0 %v90
    %v104 = vpop.xlane.xlu0 %103
    %105 = vmax.xlane.f32.xlu0 %v91
    %v106 = vpop.xlane.xlu0 %105
    %107 = vmax.xlane.f32.xlu0 %v92
    %v108 = vpop.xlane.xlu0 %107
    %v109 = vmax.f32 %v46, %v94
    %v110 = vmax.f32 %v48, %v96
    %v111 = vmax.f32 %v50, %v98
    %v112 = vmax.f32 %v52, %v100
    %v113 = vmax.f32 %v54, %v102
    %v114 = vmax.f32 %v56, %v104
    %v115 = vmax.f32 %v58, %v106
    %v116 = vmax.f32 %v60, %v108
    %117 = vadd.xlane.f32.xlu0 %v85
    %v118 = vpop.xlane.xlu0 %117
    %119 = vadd.xlane.f32.xlu0 %v86
    %v120 = vpop.xlane.xlu0 %119
    %121 = vadd.xlane.f32.xlu0 %v87
    %v122 = vpop.xlane.xlu0 %121
    %123 = vadd.xlane.f32.xlu0 %v88
    %v124 = vpop.xlane.xlu0 %123
    %125 = vadd.xlane.f32.xlu0 %v89
    %v126 = vpop.xlane.xlu0 %125
    %127 = vadd.xlane.f32.xlu0 %v90
    %v128 = vpop.xlane.xlu0 %127
    %129 = vadd.xlane.f32.xlu0 %v91
    %v130 = vpop.xlane.xlu0 %129
    %131 = vadd.xlane.f32.xlu0 %v92
    %v132 = vpop.xlane.xlu0 %131
    %v133 = vadd.f32 %v77, %v118
    %v134 = vadd.f32 %v78, %v120
    %v135 = vadd.f32 %v79, %v122
    %v136 = vadd.f32 %v80, %v124
    %v137 = vadd.f32 %v81, %v126
    %v138 = vadd.f32 %v82, %v128
    %v139 = vadd.f32 %v83, %v130
    %v140 = vadd.f32 %v84, %v132
    %v141 = vmul.f32 %v133, 0.00390625
    %v142 = vmul.f32 %v134, 0.00390625
    %v143 = vmul.f32 %v135, 0.00390625
    %v144 = vmul.f32 %v136, 0.00390625
    %v145 = vmul.f32 %v137, 0.00390625
    %v146 = vmul.f32 %v138, 0.00390625
    %v147 = vmul.f32 %v139, 0.00390625
    %v148 = vmul.f32 %v140, 0.00390625
    %v149 = vld [vmem:[%s1] sm:$0xff]
    %v150 = vld [vmem:[%s1 + $0x8] sm:$0xff]
    %v151 = vld [vmem:[%s1 + $0x10] sm:$0xff]
    %v152 = vld [vmem:[%s1 + $0x18] sm:$0xff]
    %v153 = vld [vmem:[%s2] sm:$0x1]
    %v154 = vld [vmem:[%s3] sm:$0xf]
    %v155 = vld [vmem:[%s4] sm:$0x1]
    %v157 = vperm.slane %v153, 0
    %v167 = vlaneseq
    %v168 = vand.u32 %v167, 127
    %v169 = vperm.slane %v109, %v168
    %v170 = vadd.s32 %v168, 4294967288
    %v171 = vperm.slane %v110, %v170
    %vm172 = vcmask 130112
    %v173 = vsel %vm172, %v171, %v169
    %v174 = vadd.s32 %v168, 4294967280
    %v175 = vperm.slane %v111, %v174
    %vm176 = vcmask 195712
    %v177 = vsel %vm176, %v175, %v173
    %v178 = vadd.s32 %v168, 4294967272
    %v179 = vperm.slane %v112, %v178
    %vm180 = vcmask 261312
    %v181 = vsel %vm180, %v179, %v177
    %v182 = vperm.slane %v113, %v168
    %v183 = vperm.slane %v114, %v170
    %v184 = vsel %vm172, %v183, %v182
    %v185 = vperm.slane %v115, %v174
    %v186 = vsel %vm176, %v185, %v184
    %v187 = vperm.slane %v116, %v178
    %v188 = vsel %vm180, %v187, %v186
    %vm189 = vcmask 1041409
    %v190 = vsel %vm189, %v188, %v181
    %vm191 = vcmask 261120
    %v192 = vsel %vm191, %v190, 0
    %194 = vmatpush.msra.mxu0 0.0
    %195 = vmatpush.msra.mxu0 0.0
    %196 = vmatpush.msra.mxu0 0.0
    %197 = vmatpush.msra.mxu0 0.0
    %198 = vmatpush.msra.mxu0 0.0
    %199 = vmatpush.msra.mxu0 0.0
    %200 = vmatpush.msra.mxu0 0.0
    %201 = vmatpush.msra.mxu0 0.0
    %202 = vmatpush.msra.mxu0 0.0
    %203 = vmatpush.msra.mxu0 0.0
    %204 = vmatpush.msra.mxu0 0.0
    %205 = vmatpush.msra.mxu0 0.0
    %206 = vmatpush.msra.mxu0 %v152
    %207 = vmatpush.msra.mxu0 %v151
    %208 = vmatpush.msra.mxu0 %v150
    %209 = vmatpush.msra.mxu0 %v149
    %210 = vmatmul.f32.gmra.mxu0 %v192
    %v211 = vpop.f32.mrf.mxu0
    %v212 = vadd.f32 %v157, %v211
    %213 = vdwg.mxu0
    %v214 = vmax.f32 %v212, 0.0
    %v223 = vperm.slane %v141, %v168
    %v224 = vperm.slane %v142, %v170
    %v225 = vsel %vm172, %v224, %v223
    %v226 = vperm.slane %v143, %v174
    %v227 = vsel %vm176, %v226, %v225
    %v228 = vperm.slane %v144, %v178
    %v229 = vsel %vm180, %v228, %v227
    %v230 = vperm.slane %v145, %v168
    %v231 = vperm.slane %v146, %v170
    %v232 = vsel %vm172, %v231, %v230
    %v233 = vperm.slane %v147, %v174
    %v234 = vsel %vm176, %v233, %v232
    %v235 = vperm.slane %v148, %v178
    %v236 = vsel %vm180, %v235, %v234
    %v237 = vsel %vm189, %v236, %v229
    %v238 = vsel %vm191, %v237, 0
    %240 = vmatpush.msra.mxu0 0.0
    %241 = vmatpush.msra.mxu0 0.0
    %242 = vmatpush.msra.mxu0 0.0
    %243 = vmatpush.msra.mxu0 0.0
    %244 = vmatpush.msra.mxu0 0.0
    %245 = vmatpush.msra.mxu0 0.0
    %246 = vmatpush.msra.mxu0 0.0
    %247 = vmatpush.msra.mxu0 0.0
    %248 = vmatpush.msra.mxu0 0.0
    %249 = vmatpush.msra.mxu0 0.0
    %250 = vmatpush.msra.mxu0 0.0
    %251 = vmatpush.msra.mxu0 0.0
    %252 = vmatpush.msra.mxu0 %v152
    %253 = vmatpush.msra.mxu0 %v151
    %254 = vmatpush.msra.mxu0 %v150
    %255 = vmatpush.msra.mxu0 %v149
    %256 = vmatmul.f32.gmra.mxu0 %v238
    %v257 = vpop.f32.mrf.mxu0
    %v258 = vadd.f32 %v157, %v257
    %259 = vdwg.mxu0
    %v260 = vmax.f32 %v258, 0.0
    %v261 = vadd.f32 %v214, %v260
    %v262 = vmul.f32 %v155, 2.0
    %v264 = vperm.slane %v262, 0
    %vm266 = vcmask 31744
    %v268 = vsel %vm266, %v261, 0
    %vm270 = vcmask 1043456
    %v272 = vsel %vm270, %v154, 0
    %274 = vmatpush.msra.mxu0 0.0
    %275 = vmatpush.msra.mxu0 0.0
    %276 = vmatpush.msra.mxu0 0.0
    %277 = vmatpush.msra.mxu0 0.0
    %278 = vmatpush.msra.mxu0 0.0
    %279 = vmatpush.msra.mxu0 0.0
    %280 = vmatpush.msra.mxu0 0.0
    %281 = vmatpush.msra.mxu0 0.0
    %282 = vmatpush.msra.mxu0 0.0
    %283 = vmatpush.msra.mxu0 0.0
    %284 = vmatpush.msra.mxu0 0.0
    %285 = vmatpush.msra.mxu0 0.0
    %286 = vmatpush.msra.mxu0 0.0
    %287 = vmatpush.msra.mxu0 0.0
    %288 = vmatpush.msra.mxu0 0.0
    %289 = vmatpush.msra.mxu0 %v272
    %290 = vmatmul.f32.gmra.mxu0 %v268
    %v291 = vpop.f32.mrf.mxu0
    %v292 = vadd.f32 %v264, %v291
    %293 = vdwg.mxu0
    %v294 = vxor.u32 %v292, 2147483648
    %v295 = vmul.f32 %v294, 1.442695
    %v296 = vpow.pop %v295
    %v297 = vadd.f32 %v296, 1.0
    %v298 = vrcp.pop %v297
    %v299 = vmul.f32 %v297, %v298
    %v300 = vsub.f32 1.0, %v299
    %v301 = vmul.f32 %v298, %v300
    %v302 = vadd.f32 %v298, %v301
    %vm303 = vweird.f32 %v297
    %vm304 = vweird.f32 %v298
    %vm305 = vmor %vm303, %vm304
    %v306 = vsel %vm305, %v298, %v302
    %v307 = vand.u32 2147483647, %v297
    %vm308 = vcmp.eq.f32.partialorder %v307, 8.507059e+37
    %v309 = vand.u32 %v297, 2147483648
    %v310 = vor.u32 1.1754944e-38, %v309
    %v311 = vsel %vm308, %v310, %v306
    %v312 = vmul.f32 1.0, %v311
    %v313 = vld [vmem:[#allocation2] sm:$0xff]
    %v314 = vld [vmem:[#allocation2 + $0x10] sm:$0xff]
    %v315 = vld [vmem:[#allocation2 + $0x20] sm:$0xff]
    %v316 = vld [vmem:[#allocation2 + $0x30] sm:$0xff]
    %v317 = vld [vmem:[#allocation2 + $0x40] sm:$0xff]
    %v318 = vld [vmem:[#allocation2 + $0x50] sm:$0xff]
    %v319 = vld [vmem:[#allocation2 + $0x60] sm:$0xff]
    %v320 = vld [vmem:[#allocation2 + $0x70] sm:$0xff]
    %v321 = vperm.slane %v312, 0
    %v322 = vlaneseq
    %v323 = vshrl.u32 %v322, 7
    %325 = vset.pattern.permute.xlu0 %v323
    %326 = vperm.xlu0 %325, %v321
    %v327 = vpop.permute.xlu0 %326
    %v328 = vlaneseq
    %v329 = vshrl.u32 %v328, 7
    %v330 = vadd.s32 %v329, 8
    %331 = vset.pattern.permute.xlu0 %v330
    %332 = vperm.xlu0 %331, %v321
    %v333 = vpop.permute.xlu0 %332
    %v334 = vlaneseq
    %v335 = vshrl.u32 %v334, 7
    %v336 = vadd.s32 %v335, 16
    %337 = vset.pattern.permute.xlu0 %v336
    %338 = vperm.xlu0 %337, %v321
    %v339 = vpop.permute.xlu0 %338
    %v340 = vlaneseq
    %v341 = vshrl.u32 %v340, 7
    %v342 = vadd.s32 %v341, 24
    %343 = vset.pattern.permute.xlu0 %v342
    %344 = vperm.xlu0 %343, %v321
    %v345 = vpop.permute.xlu0 %344
    %v346 = vperm.slane %v312, 1
    %v347 = vlaneseq
    %v348 = vshrl.u32 %v347, 7
    %350 = vset.pattern.permute.xlu0 %v348
    %351 = vperm.xlu0 %350, %v346
    %v352 = vpop.permute.xlu0 %351
    %v353 = vlaneseq
    %v354 = vshrl.u32 %v353, 7
    %v355 = vadd.s32 %v354, 8
    %356 = vset.pattern.permute.xlu0 %v355
    %357 = vperm.xlu0 %356, %v346
    %v358 = vpop.permute.xlu0 %357
    %v359 = vlaneseq
    %v360 = vshrl.u32 %v359, 7
    %v361 = vadd.s32 %v360, 16
    %362 = vset.pattern.permute.xlu0 %v361
    %363 = vperm.xlu0 %362, %v346
    %v364 = vpop.permute.xlu0 %363
    %v365 = vlaneseq
    %v366 = vshrl.u32 %v365, 7
    %v367 = vadd.s32 %v366, 24
    %368 = vset.pattern.permute.xlu0 %v367
    %369 = vperm.xlu0 %368, %v346
    %v370 = vpop.permute.xlu0 %369
    %v371 = vmul.f32 %v313, %v327
    %v372 = vmul.f32 %v85, %v327
    %v373 = vmul.f32 %v314, %v333
    %v374 = vmul.f32 %v86, %v333
    %v375 = vmul.f32 %v315, %v339
    %v376 = vmul.f32 %v87, %v339
    %v377 = vmul.f32 %v316, %v345
    %v378 = vmul.f32 %v88, %v345
    %v379 = vmul.f32 %v317, %v352
    %v380 = vmul.f32 %v89, %v352
    %v381 = vmul.f32 %v318, %v358
    %v382 = vmul.f32 %v90, %v358
    %v383 = vmul.f32 %v319, %v364
    %v384 = vmul.f32 %v91, %v364
    %v385 = vmul.f32 %v320, %v370
    %v386 = vmul.f32 %v92, %v370
    %387 = vst [vmem:[#allocation5] sm:$0xff] %v371
    %388 = vst [vmem:[#allocation5 + $0x8] sm:$0xff] %v372
    %389 = vst [vmem:[#allocation5 + $0x10] sm:$0xff] %v373
    %390 = vst [vmem:[#allocation5 + $0x18] sm:$0xff] %v374
    %391 = vst [vmem:[#allocation5 + $0x20] sm:$0xff] %v375
    %392 = vst [vmem:[#allocation5 + $0x28] sm:$0xff] %v376
    %393 = vst [vmem:[#allocation5 + $0x30] sm:$0xff] %v377
    %394 = vst [vmem:[#allocation5 + $0x38] sm:$0xff] %v378
    %395 = vst [vmem:[#allocation5 + $0x40] sm:$0xff] %v379
    %396 = vst [vmem:[#allocation5 + $0x48] sm:$0xff] %v380
    %397 = vst [vmem:[#allocation5 + $0x50] sm:$0xff] %v381
    %398 = vst [vmem:[#allocation5 + $0x58] sm:$0xff] %v382
    %399 = vst [vmem:[#allocation5 + $0x60] sm:$0xff] %v383
    %400 = vst [vmem:[#allocation5 + $0x68] sm:$0xff] %v384
    %401 = vst [vmem:[#allocation5 + $0x70] sm:$0xff] %v385
    %402 = vst [vmem:[#allocation5 + $0x78] sm:$0xff] %v386
    // Predicated region
    $region26: #{tpu_custom_call.1} parent=1 // pred_check
      _
    $region27: #{tpu_custom_call.1} parent=1 // pred_check_branch
      %404 = sbr.rel (0) target = $region29
    $region28: #{tpu_custom_call.1} parent=1 // pred_region
      %406 = vsyncadd [#allocation4], 0
      %s407 = sshll.u32 [#allocation5], 4
      %s408 = int_to_ptr.vmem [resolvable:$true] %s407
      %s409 = sshll.u32 %s5, 4
      %s410 = int_to_ptr.hbm [resolvable:$true] %s409
      %415 = dma.vmem_to_hbm [thread:$0]  %s408, 2048, %s410, [#allocation4], 256, 256, 16
    $region29: #{tpu_custom_call.1} parent=1 // pred_fallthru
      _
    // Predicated region
    $region30: #{tpu_custom_call.1} parent=1 // pred_check
      _
    $region31: #{tpu_custom_call.1} parent=1 // pred_check_branch
      %417 = sbr.rel (0) target = $region33
    $region32: #{tpu_custom_call.1} parent=1 // pred_region
      %419 = dma.done [#allocation4], 2048
    $region33: #{tpu_custom_call.1} parent=1 // pred_fallthru
      _
    %420 = vsyncpa [#allocation3], 1
    %421 = vsyncpa [#allocation4], 1

</llo_original>
